<compile_context>
chip_gen: v5e
topology: v5e:2x2
jax: 0.10.0
libtpu: 0.0.40
codegen_flags: <defaults>
</compile_context>

<pallas_src>
import functools

import jax
import jax.numpy as jnp
from jax import lax
from jax.experimental import pallas as pl
from jax.experimental.pallas import tpu as pltpu


def _next_pow2(v):
    return 1 if v <= 1 else 1 << (v - 1).bit_length()


def _plan_level_lengths(m, width):
    """Lane lengths (2*wp) of every pair-interleave level for m planes of `width`."""
    lengths = set()

    def rec(m_, w_):
        if m_ == 1:
            return w_
        half = rec(m_ // 2, w_)
        wp = _next_pow2(half)
        lengths.add(2 * wp)
        return 2 * half

    rec(m, width)
    return lengths


def _build_round_masks(length):
    """Per-round (q, mask_a, mask_b) for the riffle network on `length` lanes.

    mask_a / mask_b mark lanes that take their value from pltpu.roll(x, q) /
    pltpu.roll(x, length - q).  They are derived by applying the *same* rolls
    to a lane-index vector, so correctness is independent of the roll direction
    convention.  Masks are (1, length): tiny, computed once per grid step, and
    broadcast inside the selects.
    """
    axis = 1
    lane = lax.broadcasted_iota(jnp.int32, (1, length), axis)
    sched = []
    blk = length
    while blk >= 4:
        q = blk // 4
        pos = lane & (blk - 1)
        in_q2 = jnp.logical_and(pos >= q, pos < 2 * q)
        in_q3 = jnp.logical_and(pos >= 2 * q, pos < 3 * q)
        src = jnp.where(in_q2, lane + q, jnp.where(in_q3, lane - q, lane))
        mask_a = pltpu.roll(lane, q, axis=axis) == src
        mask_b = pltpu.roll(lane, length - q, axis=axis) == src
        sched.append((q, mask_a, mask_b))
        blk //= 2
    return sched


def _interleave_pair(a, b, sched_by_len):
    """Lane interleave: out[..., 2q] = a[..., q], out[..., 2q+1] = b[..., q]."""
    w0 = a.shape[-1]
    wp = _next_pow2(w0)
    if wp != w0:
        pad = jnp.zeros(a.shape[:-1] + (wp - w0,), a.dtype)
        a = jnp.concatenate([a, pad], axis=-1)
        b = jnp.concatenate([b, pad], axis=-1)
    x = jnp.concatenate([a, b], axis=-1)
    length = 2 * wp
    axis = x.ndim - 1
    for q, mask_a, mask_b in sched_by_len[length]:
        xa = pltpu.roll(x, q, axis=axis)            # XLU
        xb = pltpu.roll(x, length - q, axis=axis)   # XLU
        x = jnp.where(mask_a, xa, jnp.where(mask_b, xb, x))
    if wp != w0:
        x = x[..., : 2 * w0]
    return x


def _interleave_planes(planes, sched_by_len):
    """s-way lane interleave (len(planes)=2^k): out[..., q*s+r] = planes[r][..., q]."""
    m = len(planes)
    if m == 1:
        return planes[0]
    even = _interleave_planes(planes[0::2], sched_by_len)
    odd = _interleave_planes(planes[1::2], sched_by_len)
    return _interleave_pair(even, odd, sched_by_len)


def _pack_u16_pair(first, second, low_first):
    """Pack two u16 planes into u32 words; `first` lands in the half that the
    external narrowing bitcast exposes at index 0."""
    f = first.astype(jnp.uint32)
    s_ = second.astype(jnp.uint32)
    if low_first:
        return f | (s_ << 16)
    return s_ | (f << 16)


def _d2s_kernel(x_ref, o_ref, *, s, rc, pack, low_first):
    # x_ref: (cb, s*s, th, w)   o_ref: (cb, th, s*slab_w)
    cb, _, th, w = x_ref.shape
    m = (s // 2) if pack else s                   # planes entering the riffle
    slab_w = (s * w) // 2 if pack else s * w      # output lanes per r1 slab

    # Hoisted (1, L) riffle masks: computed once per grid step, reused by every
    # (channel, row-chunk, r1) slab.
    sched_by_len = {
        length: _build_round_masks(length)
        for length in sorted(_plan_level_lengths(m, w))
    }

    n_chunks = th // rc

    def chan_body(c, carry):
        def row_body(j, carry2):
            row = pl.multiple_of(j * rc, rc)
            for r1 in range(s):
                planes = [
                    x_ref[c, r1 * s + r2, pl.ds(row, rc), :] for r2 in range(s)
                ]
                if pack:
                    planes = [
                        _pack_u16_pair(planes[2 * k], planes[2 * k + 1], low_first)
                        for k in range(s // 2)
                    ]
                slab = _interleave_planes(planes, sched_by_len)
                # Dense, lane-wide store of this slab; no full-row concatenate.
                o_ref[c, pl.ds(row, rc), r1 * slab_w:(r1 + 1) * slab_w] = slab
            return carry2

        lax.fori_loop(0, n_chunks, row_body, 0)
        return carry

    lax.fori_loop(0, cb, chan_body, 0)


def _pick_th(h, row_bytes, target_bytes):
    """Rows per grid step: divisor of h that is a multiple of 8 (or h itself)."""
    cands = [d for d in range(8, h + 1, 8) if h % d == 0]
    cands.append(h)
    fitting = [d for d in cands if d * row_bytes <= target_bytes]
    return max(fitting) if fitting else min(cands)


def _pick_cb(n, th_bytes, target_bytes):
    """Channels per grid step: divisor of n within the block-byte budget."""
    budget = max(target_bytes, th_bytes)          # guard: cb -> 1 if th alone is big
    divs = [d for d in range(1, n + 1) if n % d == 0 and d * th_bytes <= budget]
    even = [d for d in divs if (n // d) % 2 == 0]  # keep sharded grid axis even (v7x)
    pool = even if even else divs
    return max(pool) if pool else 1


def _pick_rc(th, slab_row_bytes, slab_budget=32 * 1024):
    """Rows per inner compute chunk: keeps riffle intermediates within vregs."""
    if th % 8 != 0:
        return th
    max_rc = max(8, slab_budget // max(1, slab_row_bytes))
    best = 8
    r = 8
    while r <= min(th, max_rc):
        if th % r == 0:
            best = r
        r += 8
    return best


_LOW_HALF_FIRST = None


def _low_half_first():
    """Does lax.bitcast_convert_type(u32 -> 16-bit) expose the low half at index 0?"""
    global _LOW_HALF_FIRST
    if _LOW_HALF_FIRST is None:
        probe = lax.bitcast_convert_type(
            jnp.array([0x00020001], dtype=jnp.uint32), jnp.uint16)
        _LOW_HALF_FIRST = bool(jnp.asarray(probe)[0, 0] == 1)
    return _LOW_HALF_FIRST


def d2s(x, scale_factor, *, target_block_bytes=2 * 1024 * 1024):
    """Pallas TPU depth-to-space: (B, C, H, W) -> (B, C//s^2, H*s, W*s)."""
    b, c, h, w = x.shape
    s = int(scale_factor)
    s2 = s * s
    assert c % s2 == 0, "in_channel must be divisible by scale_factor**2"
    assert s >= 1 and (s & (s - 1)) == 0, "power-of-two scale_factor required"
    # TODO(synk): non-power-of-two scale_factor would need a generalized lane
    # permutation; the typical D2S configurations (s = 2, 4) are covered.
    c_out = c // s2
    n = b * c_out

    itemsize = jnp.dtype(x.dtype).itemsize
    pack = itemsize == 2 and s % 2 == 0           # 16-bit dtypes: pack r2 pairs -> u32
    low_first = _low_half_first() if pack else True

    row_bytes = s2 * w * itemsize                 # bytes per (channel, output row)
    th = _pick_th(h, row_bytes, target_block_bytes)
    cb = _pick_cb(n, th * row_bytes, target_block_bytes)
    rc = _pick_rc(th, s * w * itemsize)
    block_bytes = cb * th * row_bytes

    if pack:
        xk = lax.bitcast_convert_type(x, jnp.uint16)   # free same-width reinterpret
        out_dtype = jnp.uint32
        out_w = s2 * w // 2
    else:
        xk = x
        out_dtype = x.dtype
        out_w = s2 * w
    # Free row-major reshape: fold batch with output channel, group sub-channels.
    xr = xk.reshape(n, s2, h, w)

    kernel = functools.partial(_d2s_kernel, s=s, rc=rc, pack=pack, low_first=low_first)
    vmem_limit = int(min(48 * 1024 * 1024,
                         max(32 * 1024 * 1024, 4 * block_bytes + (4 << 20))))

    y = pl.pallas_call(
        kernel,
        out_shape=jax.ShapeDtypeStruct((n, h, out_w), out_dtype),
        grid=(n // cb, h // th),
        in_specs=[
            pl.BlockSpec((cb, s2, th, w), lambda ni, hi: (ni, 0, hi, 0)),
        ],
        out_specs=pl.BlockSpec((cb, th, out_w), lambda ni, hi: (ni, hi, 0)),
        compiler_params=pltpu.CompilerParams(
            dimension_semantics=("parallel", "parallel"),
            vmem_limit_bytes=vmem_limit),
    )(xr)

    if pack:
        # Narrowing bitcast appends a size-2 minor dim; index 0 holds `first`
        # by construction (packing order matched the probed convention).
        y = lax.bitcast_convert_type(y, x.dtype)       # (n, h, out_w, 2)
        y = y.reshape(n, h, s2 * w)

    # (n, h, s*s*w) collapses row-major exactly onto (b, c_out, h*s, w*s).
    return y.reshape(b, c_out, h * s, w * s)


def d2s_reference(x, s):
    # Pure-JAX mirror of the PyTorch forward, for verification.
    b, c, h, w = x.shape
    xx = x.reshape(b, c // (s * s), s, s, h, w)
    xx = jnp.transpose(xx, (0, 1, 4, 2, 5, 3))
    return xx.reshape(b, c // (s * s), h * s, w * s)


if __name__ == "__main__":
    key = jax.random.PRNGKey(0)
    cases = [
        ((2, 8, 16, 16), 2, jnp.float32),    # generic roll/select riffle path
        ((2, 8, 16, 16), 2, jnp.bfloat16),   # pure u32 pair-packing path (no riffle)
        ((1, 32, 16, 8), 4, jnp.bfloat16),   # packing + u32 riffle path
        ((1, 16, 8, 16), 4, jnp.float32),    # multi-level f32 riffle path
    ]
    for i, (shape, scale, dtype) in enumerate(cases):
        k = jax.random.fold_in(key, i)
        x = jax.random.normal(k, shape, dtype=jnp.float32).astype(dtype)

        out = jax.block_until_ready(d2s(x, scale))
        ref = d2s_reference(x, scale)

        b, c, h, w = shape
        assert out.shape == (b, c // (scale * scale), h * scale, w * scale)
        assert out.dtype == x.dtype
        assert bool(jnp.array_equal(out, ref)), f"mismatch vs reference (case {i})"

    print("KERNEL_OK")
</pallas_src>

<mosaic_0001>
module attributes {stable_mosaic.version = 11 : i64} {
  func.func @_d2s_kernel(%arg0: i32, %arg1: i32, %arg2: memref<2x4x16x16xf32, #tpu.memory_space<vmem>>, %arg3: memref<2x16x64xf32, #tpu.memory_space<vmem>>) attributes {dimension_semantics = [#tpu.dimension_semantics<parallel>, #tpu.dimension_semantics<parallel>], iteration_bounds = array<i64: 2, 1>, scalar_prefetch = 0 : i64, scratch_operands = 0 : i64, tpu.core_type = #tpu.core_type<tc>, window_params = [{transform_indices = @transform_0, window_bounds = array<i64: 2, 4, 16, 16>}, {transform_indices = @transform_1, window_bounds = array<i64: 2, 16, 64>}]} {
    %0 = tpu.iota {dimensions = array<i32: 1>} : vector<1x32xi32>
    %c31_i32 = arith.constant 31 : i32
    %1 = vector.broadcast %c31_i32 : i32 to vector<1x32xi32>
    %2 = arith.andi %0, %1 : vector<1x32xi32>
    %c8_i32 = arith.constant 8 : i32
    %3 = vector.broadcast %c8_i32 : i32 to vector<1x32xi32>
    %4 = arith.cmpi sge, %2, %3 : vector<1x32xi32>
    %c16_i32 = arith.constant 16 : i32
    %5 = vector.broadcast %c16_i32 : i32 to vector<1x32xi32>
    %6 = arith.cmpi slt, %2, %5 : vector<1x32xi32>
    %7 = arith.andi %4, %6 : vector<1x32xi1>
    %c16_i32_0 = arith.constant 16 : i32
    %8 = vector.broadcast %c16_i32_0 : i32 to vector<1x32xi32>
    %9 = arith.cmpi sge, %2, %8 : vector<1x32xi32>
    %c24_i32 = arith.constant 24 : i32
    %10 = vector.broadcast %c24_i32 : i32 to vector<1x32xi32>
    %11 = arith.cmpi slt, %2, %10 : vector<1x32xi32>
    %12 = arith.andi %9, %11 : vector<1x32xi1>
    %c8_i32_1 = arith.constant 8 : i32
    %13 = vector.broadcast %c8_i32_1 : i32 to vector<1x32xi32>
    %14 = arith.addi %0, %13 : vector<1x32xi32>
    %c8_i32_2 = arith.constant 8 : i32
    %15 = vector.broadcast %c8_i32_2 : i32 to vector<1x32xi32>
    %16 = arith.subi %0, %15 : vector<1x32xi32>
    %17 = arith.select %12, %16, %0 : vector<1x32xi1>, vector<1x32xi32>
    %18 = arith.select %7, %14, %17 : vector<1x32xi1>, vector<1x32xi32>
    %c8_i32_3 = arith.constant 8 : i32
    %19 = tpu.dynamic_rotate %0 by %c8_i32_3 dim 1 : vector<1x32xi32>, i32 -> vector<1x32xi32>
    %20 = arith.cmpi eq, %19, %18 : vector<1x32xi32>
    %c24_i32_4 = arith.constant 24 : i32
    %21 = tpu.dynamic_rotate %0 by %c24_i32_4 dim 1 : vector<1x32xi32>, i32 -> vector<1x32xi32>
    %22 = arith.cmpi eq, %21, %18 : vector<1x32xi32>
    %c15_i32 = arith.constant 15 : i32
    %23 = vector.broadcast %c15_i32 : i32 to vector<1x32xi32>
    %24 = arith.andi %0, %23 : vector<1x32xi32>
    %c4_i32 = arith.constant 4 : i32
    %25 = vector.broadcast %c4_i32 : i32 to vector<1x32xi32>
    %26 = arith.cmpi sge, %24, %25 : vector<1x32xi32>
    %c8_i32_5 = arith.constant 8 : i32
    %27 = vector.broadcast %c8_i32_5 : i32 to vector<1x32xi32>
    %28 = arith.cmpi slt, %24, %27 : vector<1x32xi32>
    %29 = arith.andi %26, %28 : vector<1x32xi1>
    %c8_i32_6 = arith.constant 8 : i32
    %30 = vector.broadcast %c8_i32_6 : i32 to vector<1x32xi32>
    %31 = arith.cmpi sge, %24, %30 : vector<1x32xi32>
    %c12_i32 = arith.constant 12 : i32
    %32 = vector.broadcast %c12_i32 : i32 to vector<1x32xi32>
    %33 = arith.cmpi slt, %24, %32 : vector<1x32xi32>
    %34 = arith.andi %31, %33 : vector<1x32xi1>
    %c4_i32_7 = arith.constant 4 : i32
    %35 = vector.broadcast %c4_i32_7 : i32 to vector<1x32xi32>
    %36 = arith.addi %0, %35 : vector<1x32xi32>
    %c4_i32_8 = arith.constant 4 : i32
    %37 = vector.broadcast %c4_i32_8 : i32 to vector<1x32xi32>
    %38 = arith.subi %0, %37 : vector<1x32xi32>
    %39 = arith.select %34, %38, %0 : vector<1x32xi1>, vector<1x32xi32>
    %40 = arith.select %29, %36, %39 : vector<1x32xi1>, vector<1x32xi32>
    %c4_i32_9 = arith.constant 4 : i32
    %41 = tpu.dynamic_rotate %0 by %c4_i32_9 dim 1 : vector<1x32xi32>, i32 -> vector<1x32xi32>
    %42 = arith.cmpi eq, %41, %40 : vector<1x32xi32>
    %c28_i32 = arith.constant 28 : i32
    %43 = tpu.dynamic_rotate %0 by %c28_i32 dim 1 : vector<1x32xi32>, i32 -> vector<1x32xi32>
    %44 = arith.cmpi eq, %43, %40 : vector<1x32xi32>
    %c7_i32 = arith.constant 7 : i32
    %45 = vector.broadcast %c7_i32 : i32 to vector<1x32xi32>
    %46 = arith.andi %0, %45 : vector<1x32xi32>
    %c2_i32 = arith.constant 2 : i32
    %47 = vector.broadcast %c2_i32 : i32 to vector<1x32xi32>
    %48 = arith.cmpi sge, %46, %47 : vector<1x32xi32>
    %c4_i32_10 = arith.constant 4 : i32
    %49 = vector.broadcast %c4_i32_10 : i32 to vector<1x32xi32>
    %50 = arith.cmpi slt, %46, %49 : vector<1x32xi32>
    %51 = arith.andi %48, %50 : vector<1x32xi1>
    %c4_i32_11 = arith.constant 4 : i32
    %52 = vector.broadcast %c4_i32_11 : i32 to vector<1x32xi32>
    %53 = arith.cmpi sge, %46, %52 : vector<1x32xi32>
    %c6_i32 = arith.constant 6 : i32
    %54 = vector.broadcast %c6_i32 : i32 to vector<1x32xi32>
    %55 = arith.cmpi slt, %46, %54 : vector<1x32xi32>
    %56 = arith.andi %53, %55 : vector<1x32xi1>
    %c2_i32_12 = arith.constant 2 : i32
    %57 = vector.broadcast %c2_i32_12 : i32 to vector<1x32xi32>
    %58 = arith.addi %0, %57 : vector<1x32xi32>
    %c2_i32_13 = arith.constant 2 : i32
    %59 = vector.broadcast %c2_i32_13 : i32 to vector<1x32xi32>
    %60 = arith.subi %0, %59 : vector<1x32xi32>
    %61 = arith.select %56, %60, %0 : vector<1x32xi1>, vector<1x32xi32>
    %62 = arith.select %51, %58, %61 : vector<1x32xi1>, vector<1x32xi32>
    %c2_i32_14 = arith.constant 2 : i32
    %63 = tpu.dynamic_rotate %0 by %c2_i32_14 dim 1 : vector<1x32xi32>, i32 -> vector<1x32xi32>
    %64 = arith.cmpi eq, %63, %62 : vector<1x32xi32>
    %c30_i32 = arith.constant 30 : i32
    %65 = tpu.dynamic_rotate %0 by %c30_i32 dim 1 : vector<1x32xi32>, i32 -> vector<1x32xi32>
    %66 = arith.cmpi eq, %65, %62 : vector<1x32xi32>
    %c3_i32 = arith.constant 3 : i32
    %67 = vector.broadcast %c3_i32 : i32 to vector<1x32xi32>
    %68 = arith.andi %0, %67 : vector<1x32xi32>
    %c1_i32 = arith.constant 1 : i32
    %69 = vector.broadcast %c1_i32 : i32 to vector<1x32xi32>
    %70 = arith.cmpi sge, %68, %69 : vector<1x32xi32>
    %c2_i32_15 = arith.constant 2 : i32
    %71 = vector.broadcast %c2_i32_15 : i32 to vector<1x32xi32>
    %72 = arith.cmpi slt, %68, %71 : vector<1x32xi32>
    %73 = arith.andi %70, %72 : vector<1x32xi1>
    %c2_i32_16 = arith.constant 2 : i32
    %74 = vector.broadcast %c2_i32_16 : i32 to vector<1x32xi32>
    %75 = arith.cmpi sge, %68, %74 : vector<1x32xi32>
    %c3_i32_17 = arith.constant 3 : i32
    %76 = vector.broadcast %c3_i32_17 : i32 to vector<1x32xi32>
    %77 = arith.cmpi slt, %68, %76 : vector<1x32xi32>
    %78 = arith.andi %75, %77 : vector<1x32xi1>
    %c1_i32_18 = arith.constant 1 : i32
    %79 = vector.broadcast %c1_i32_18 : i32 to vector<1x32xi32>
    %80 = arith.addi %0, %79 : vector<1x32xi32>
    %c1_i32_19 = arith.constant 1 : i32
    %81 = vector.broadcast %c1_i32_19 : i32 to vector<1x32xi32>
    %82 = arith.subi %0, %81 : vector<1x32xi32>
    %83 = arith.select %78, %82, %0 : vector<1x32xi1>, vector<1x32xi32>
    %84 = arith.select %73, %80, %83 : vector<1x32xi1>, vector<1x32xi32>
    %c1_i32_20 = arith.constant 1 : i32
    %85 = tpu.dynamic_rotate %0 by %c1_i32_20 dim 1 : vector<1x32xi32>, i32 -> vector<1x32xi32>
    %86 = arith.cmpi eq, %85, %84 : vector<1x32xi32>
    %c31_i32_21 = arith.constant 31 : i32
    %87 = tpu.dynamic_rotate %0 by %c31_i32_21 dim 1 : vector<1x32xi32>, i32 -> vector<1x32xi32>
    %88 = arith.cmpi eq, %87, %84 : vector<1x32xi32>
    %c0_i32 = arith.constant 0 : i32
    %c2_i32_22 = arith.constant 2 : i32
    %89 = arith.addi %c0_i32, %c2_i32_22 : i32
    %c1_i32_23 = arith.constant 1 : i32
    scf.for %arg4 = %c0_i32 to %89 step %c1_i32_23  : i32 {
      %c0_i32_25 = arith.constant 0 : i32
      %c16_i32_26 = arith.constant 16 : i32
      %90 = arith.muli %c0_i32_25, %c16_i32_26 : i32
      %91 = tpu.assume_multiple %90, 16 : i32
      %92 = arith.index_cast %arg4 : i32 to index
      %c0 = arith.constant 0 : index
      %93 = arith.index_cast %91 : i32 to index
      %c0_27 = arith.constant 0 : index
      %94 = vector.load %arg2[%92, %c0, %93, %c0_27] : memref<2x4x16x16xf32, #tpu.memory_space<vmem>>, vector<1x1x16x16xf32>
      %95 = vector.shape_cast %94 : vector<1x1x16x16xf32> to vector<16x16xf32>
      %96 = arith.index_cast %arg4 : i32 to index
      %c1 = arith.constant 1 : index
      %97 = arith.index_cast %91 : i32 to index
      %c0_28 = arith.constant 0 : index
      %98 = vector.load %arg2[%96, %c1, %97, %c0_28] : memref<2x4x16x16xf32, #tpu.memory_space<vmem>>, vector<1x1x16x16xf32>
      %99 = vector.shape_cast %98 : vector<1x1x16x16xf32> to vector<16x16xf32>
      %100 = tpu.concatenate %95, %99 in 1 : vector<16x16xf32>, vector<16x16xf32> -> vector<16x32xf32>
      %c8_i32_29 = arith.constant 8 : i32
      %101 = tpu.dynamic_rotate %100 by %c8_i32_29 dim 1 : vector<16x32xf32>, i32 -> vector<16x32xf32>
      %c24_i32_30 = arith.constant 24 : i32
      %102 = tpu.dynamic_rotate %100 by %c24_i32_30 dim 1 : vector<16x32xf32>, i32 -> vector<16x32xf32>
      %103 = vector.shape_cast %22 : vector<1x32xi1> to vector<1x32xi1>
      %104 = vector.broadcast %103 : vector<1x32xi1> to vector<16x32xi1>
      %105 = arith.select %104, %102, %100 : vector<16x32xi1>, vector<16x32xf32>
      %106 = vector.shape_cast %20 : vector<1x32xi1> to vector<1x32xi1>
      %107 = vector.broadcast %106 : vector<1x32xi1> to vector<16x32xi1>
      %108 = arith.select %107, %101, %105 : vector<16x32xi1>, vector<16x32xf32>
      %c4_i32_31 = arith.constant 4 : i32
      %109 = tpu.dynamic_rotate %108 by %c4_i32_31 dim 1 : vector<16x32xf32>, i32 -> vector<16x32xf32>
      %c28_i32_32 = arith.constant 28 : i32
      %110 = tpu.dynamic_rotate %108 by %c28_i32_32 dim 1 : vector<16x32xf32>, i32 -> vector<16x32xf32>
      %111 = vector.shape_cast %44 : vector<1x32xi1> to vector<1x32xi1>
      %112 = vector.broadcast %111 : vector<1x32xi1> to vector<16x32xi1>
      %113 = arith.select %112, %110, %108 : vector<16x32xi1>, vector<16x32xf32>
      %114 = vector.shape_cast %42 : vector<1x32xi1> to vector<1x32xi1>
      %115 = vector.broadcast %114 : vector<1x32xi1> to vector<16x32xi1>
      %116 = arith.select %115, %109, %113 : vector<16x32xi1>, vector<16x32xf32>
      %c2_i32_33 = arith.constant 2 : i32
      %117 = tpu.dynamic_rotate %116 by %c2_i32_33 dim 1 : vector<16x32xf32>, i32 -> vector<16x32xf32>
      %c30_i32_34 = arith.constant 30 : i32
      %118 = tpu.dynamic_rotate %116 by %c30_i32_34 dim 1 : vector<16x32xf32>, i32 -> vector<16x32xf32>
      %119 = vector.shape_cast %66 : vector<1x32xi1> to vector<1x32xi1>
      %120 = vector.broadcast %119 : vector<1x32xi1> to vector<16x32xi1>
      %121 = arith.select %120, %118, %116 : vector<16x32xi1>, vector<16x32xf32>
      %122 = vector.shape_cast %64 : vector<1x32xi1> to vector<1x32xi1>
      %123 = vector.broadcast %122 : vector<1x32xi1> to vector<16x32xi1>
      %124 = arith.select %123, %117, %121 : vector<16x32xi1>, vector<16x32xf32>
      %c1_i32_35 = arith.constant 1 : i32
      %125 = tpu.dynamic_rotate %124 by %c1_i32_35 dim 1 : vector<16x32xf32>, i32 -> vector<16x32xf32>
      %c31_i32_36 = arith.constant 31 : i32
      %126 = tpu.dynamic_rotate %124 by %c31_i32_36 dim 1 : vector<16x32xf32>, i32 -> vector<16x32xf32>
      %127 = vector.shape_cast %88 : vector<1x32xi1> to vector<1x32xi1>
      %128 = vector.broadcast %127 : vector<1x32xi1> to vector<16x32xi1>
      %129 = arith.select %128, %126, %124 : vector<16x32xi1>, vector<16x32xf32>
      %130 = vector.shape_cast %86 : vector<1x32xi1> to vector<1x32xi1>
      %131 = vector.broadcast %130 : vector<1x32xi1> to vector<16x32xi1>
      %132 = arith.select %131, %125, %129 : vector<16x32xi1>, vector<16x32xf32>
      %133 = arith.index_cast %arg4 : i32 to index
      %134 = arith.index_cast %91 : i32 to index
      %c0_37 = arith.constant 0 : index
      %135 = vector.load %arg3[%133, %134, %c0_37] : memref<2x16x64xf32, #tpu.memory_space<vmem>>, vector<1x16x32xf32>
      %136 = vector.shape_cast %135 : vector<1x16x32xf32> to vector<16x32xf32>
      %137 = vector.shape_cast %132 : vector<16x32xf32> to vector<1x16x32xf32>
      tpu.vector_store %arg3[%133, %134, %c0_37], %137 {strides = array<i32>} : memref<2x16x64xf32, #tpu.memory_space<vmem>>, vector<1x16x32xf32>,
      %138 = arith.index_cast %arg4 : i32 to index
      %c2 = arith.constant 2 : index
      %139 = arith.index_cast %91 : i32 to index
      %c0_38 = arith.constant 0 : index
      %140 = vector.load %arg2[%138, %c2, %139, %c0_38] : memref<2x4x16x16xf32, #tpu.memory_space<vmem>>, vector<1x1x16x16xf32>
      %141 = vector.shape_cast %140 : vector<1x1x16x16xf32> to vector<16x16xf32>
      %142 = arith.index_cast %arg4 : i32 to index
      %c3 = arith.constant 3 : index
      %143 = arith.index_cast %91 : i32 to index
      %c0_39 = arith.constant 0 : index
      %144 = vector.load %arg2[%142, %c3, %143, %c0_39] : memref<2x4x16x16xf32, #tpu.memory_space<vmem>>, vector<1x1x16x16xf32>
      %145 = vector.shape_cast %144 : vector<1x1x16x16xf32> to vector<16x16xf32>
      %146 = tpu.concatenate %141, %145 in 1 : vector<16x16xf32>, vector<16x16xf32> -> vector<16x32xf32>
      %c8_i32_40 = arith.constant 8 : i32
      %147 = tpu.dynamic_rotate %146 by %c8_i32_40 dim 1 : vector<16x32xf32>, i32 -> vector<16x32xf32>
      %c24_i32_41 = arith.constant 24 : i32
      %148 = tpu.dynamic_rotate %146 by %c24_i32_41 dim 1 : vector<16x32xf32>, i32 -> vector<16x32xf32>
      %149 = vector.shape_cast %22 : vector<1x32xi1> to vector<1x32xi1>
      %150 = vector.broadcast %149 : vector<1x32xi1> to vector<16x32xi1>
      %151 = arith.select %150, %148, %146 : vector<16x32xi1>, vector<16x32xf32>
      %152 = vector.shape_cast %20 : vector<1x32xi1> to vector<1x32xi1>
      %153 = vector.broadcast %152 : vector<1x32xi1> to vector<16x32xi1>
      %154 = arith.select %153, %147, %151 : vector<16x32xi1>, vector<16x32xf32>
      %c4_i32_42 = arith.constant 4 : i32
      %155 = tpu.dynamic_rotate %154 by %c4_i32_42 dim 1 : vector<16x32xf32>, i32 -> vector<16x32xf32>
      %c28_i32_43 = arith.constant 28 : i32
      %156 = tpu.dynamic_rotate %154 by %c28_i32_43 dim 1 : vector<16x32xf32>, i32 -> vector<16x32xf32>
      %157 = vector.shape_cast %44 : vector<1x32xi1> to vector<1x32xi1>
      %158 = vector.broadcast %157 : vector<1x32xi1> to vector<16x32xi1>
      %159 = arith.select %158, %156, %154 : vector<16x32xi1>, vector<16x32xf32>
      %160 = vector.shape_cast %42 : vector<1x32xi1> to vector<1x32xi1>
      %161 = vector.broadcast %160 : vector<1x32xi1> to vector<16x32xi1>
      %162 = arith.select %161, %155, %159 : vector<16x32xi1>, vector<16x32xf32>
      %c2_i32_44 = arith.constant 2 : i32
      %163 = tpu.dynamic_rotate %162 by %c2_i32_44 dim 1 : vector<16x32xf32>, i32 -> vector<16x32xf32>
      %c30_i32_45 = arith.constant 30 : i32
      %164 = tpu.dynamic_rotate %162 by %c30_i32_45 dim 1 : vector<16x32xf32>, i32 -> vector<16x32xf32>
      %165 = vector.shape_cast %66 : vector<1x32xi1> to vector<1x32xi1>
      %166 = vector.broadcast %165 : vector<1x32xi1> to vector<16x32xi1>
      %167 = arith.select %166, %164, %162 : vector<16x32xi1>, vector<16x32xf32>
      %168 = vector.shape_cast %64 : vector<1x32xi1> to vector<1x32xi1>
      %169 = vector.broadcast %168 : vector<1x32xi1> to vector<16x32xi1>
      %170 = arith.select %169, %163, %167 : vector<16x32xi1>, vector<16x32xf32>
      %c1_i32_46 = arith.constant 1 : i32
      %171 = tpu.dynamic_rotate %170 by %c1_i32_46 dim 1 : vector<16x32xf32>, i32 -> vector<16x32xf32>
      %c31_i32_47 = arith.constant 31 : i32
      %172 = tpu.dynamic_rotate %170 by %c31_i32_47 dim 1 : vector<16x32xf32>, i32 -> vector<16x32xf32>
      %173 = vector.shape_cast %88 : vector<1x32xi1> to vector<1x32xi1>
      %174 = vector.broadcast %173 : vector<1x32xi1> to vector<16x32xi1>
      %175 = arith.select %174, %172, %170 : vector<16x32xi1>, vector<16x32xf32>
      %176 = vector.shape_cast %86 : vector<1x32xi1> to vector<1x32xi1>
      %177 = vector.broadcast %176 : vector<1x32xi1> to vector<16x32xi1>
      %178 = arith.select %177, %171, %175 : vector<16x32xi1>, vector<16x32xf32>
      %179 = arith.index_cast %arg4 : i32 to index
      %180 = arith.index_cast %91 : i32 to index
      %c32 = arith.constant 32 : index
      %181 = vector.load %arg3[%179, %180, %c32] : memref<2x16x64xf32, #tpu.memory_space<vmem>>, vector<1x16x32xf32>
      %182 = vector.shape_cast %181 : vector<1x16x32xf32> to vector<16x32xf32>
      %183 = vector.shape_cast %178 : vector<16x32xf32> to vector<1x16x32xf32>
      tpu.vector_store %arg3[%179, %180, %c32], %183 {strides = array<i32>} : memref<2x16x64xf32, #tpu.memory_space<vmem>>, vector<1x16x32xf32>,
      %c1_i32_48 = arith.constant 1 : i32
    }
    %c2_i32_24 = arith.constant 2 : i32
    return
  }
  func.func @transform_0(%arg0: i32, %arg1: i32) -> (i32, i32, i32, i32) {
    %c0_i32 = arith.constant 0 : i32
    %c0_i32_0 = arith.constant 0 : i32
    %c0_i32_1 = arith.constant 0 : i32
    return %arg0, %c0_i32, %arg1, %c0_i32_0 : i32, i32, i32, i32
  }
  func.func @transform_1(%arg0: i32, %arg1: i32) -> (i32, i32, i32) {
    %c0_i32 = arith.constant 0 : i32
    %c0_i32_0 = arith.constant 0 : i32
    return %arg0, %arg1, %c0_i32 : i32, i32, i32
  }
}

</mosaic_0001>

<llo_original>
// kernel: tpu_custom_call.1
$region0: #{tpu_custom_call.1}
  #allocation0 [shape = 'u32[]', space=smem, size = 0x4, offset = 0x4, fixed_abs, tag = 'smem constant byte address 0x4 - core index']
  #allocation1 [shape = 'u32[72,128]{1,0:T(1,128)}', space=vmem, size = 0x9000, scoped, tag = 'internal scratch']
  %s0 = inlined_call_operand.hbm [shape: f32[4,4,16,16], index: 0, kind: input, shape index: {}]
  %s1 = inlined_call_operand.hbm [shape: f32[4,16,64], index: 1, kind: output, shape index: {}]
  %s2 = sld [smem:[#allocation0]]
  $region48: #{tpu_custom_call.1} parent=0
    _
  %s4 = ssub.s32 1, %s2
  %s5 = scalar_select 0, %s4, %s2
  $region1: #{tpu_custom_call.1} parent=0
    #allocation2 [shape = 'u8[131072]{0}', space=vmem, size = 0x20000, scoped, tag = 'input window, operand 0']
    #allocation3 [shape = 's32[2]{0}', space=sflag, size = 0x8, scoped, tag = 'scoped memory for tpu_custom_call.1']
    #allocation4 [shape = 's32[2]{0}', space=sflag, size = 0x8, scoped, tag = 'scoped memory for tpu_custom_call.1']
    #allocation5 [shape = 'u8[32768]{0}', space=vmem, size = 0x8000, scoped, tag = 'output window, operand 0']
    %6 = vsyncpa [#allocation3], 0
    %s7 = scalar_lea.sflag [#allocation3], 1
    %8 = vsyncpa %s7, 0
    %9 = vsyncpa [#allocation4], 0
    %s10 = scalar_lea.sflag [#allocation4], 1
    %11 = vsyncpa %s10, 0
    loop: start=0, step=1, limit=4
    $region2: #{tpu_custom_call.1} parent=1 // loop_pre_header
      _
    $region3: #{tpu_custom_call.1} parent=1 // loop_header
      %s13 = sphi 0, %s17
      %p14 = scmp.ge.s32.totalorder %s13, 4
      %s20 = sphi 0, %s32
      %s21 = sphi 0, %s28
      %s22 = sphi 0, %s20
      %s23 = sphi 0, %s21
      %s24 = sphi 0, %s22
      %s25 = sphi 0, %s23
      %s37 = sphi 0, %s39
      %s40 = sphi 0, %s37
      %s41 = sphi 0, %s40
      %s57 = sphi 0, %s41
      %s65 = sphi 0, %s67
      %s68 = sphi 0, %s65
      %s69 = sphi 0, %s68
      %s85 = sphi 0, %s69
    $region4: #{tpu_custom_call.1} parent=1 // loop_header_branch
      %16 = sbr.rel (%p14) target = $region8
    $region5: #{tpu_custom_call.1} parent=1 // loop_body
      %s18 = ssub.s32 %s13, 1
      %s19 = ssub.s32 %s13, 2
      %s26 = sadd.s32 1, %s21
      %p27 = scmp.ge.s32.totalorder %s26, 1
      %s28 = scalar_select %p27, 0, %s26
      %s29 = sadd.s32 1, %s20
      %s30 = scalar_select %p27, %s29, %s20
      %p31 = scmp.ge.s32.totalorder %s30, 2
      %s32 = scalar_select %p31, 0, %s30
      %s33 = ssub.s32 %s20, %s32
      %s34 = ssub.s32 %s21, %s28
      %s35 = sor.u32 %s33, %s34
      %p36 = scmp.eq.s32.totalorder %s35, 0
      %s38 = sadd.s32 %s37, 1
      %s39 = scalar_select %p36, %s37, %s38
      %p42 = pneg %p36
      %p43 = scmp.eq.s32.totalorder %s13, 1
      %p44 = por %p42, %p43
      %p45 = scmp.ne.s32.totalorder %s37, %s40
      %p46 = scmp.eq.s32.totalorder %s13, 0
      %p47 = por %p45, %p46
      %p48 = scmp.ne.s32.totalorder %s37, %s40
      %p49 = scmp.eq.s32.totalorder %s18, 1
      %p50 = por %p48, %p49
      %p51 = scmp.ne.s32.totalorder %s40, %s41
      %p52 = scmp.eq.s32.totalorder %s18, 0
      %p53 = por %p51, %p52
      %p54 = scmp.ne.s32.totalorder %s40, %s41
      %p55 = scmp.eq.s32.totalorder %s19, 1
      %p56 = por %p54, %p55
      %p58 = scmp.ne.s32.totalorder %s41, %s57
      %p59 = scmp.eq.s32.totalorder %s19, 0
      %p60 = por %p58, %p59
      %s61 = ssub.s32 %s20, %s32
      %s62 = ssub.s32 %s21, %s28
      %s63 = sor.u32 %s61, %s62
      %p64 = scmp.eq.s32.totalorder %s63, 0
      %s66 = sadd.s32 %s65, 1
      %s67 = scalar_select %p64, %s65, %s66
      %p70 = pneg %p64
      %p71 = scmp.eq.s32.totalorder %s13, 1
      %p72 = por %p70, %p71
      %p73 = scmp.ne.s32.totalorder %s65, %s68
      %p74 = scmp.eq.s32.totalorder %s13, 0
      %p75 = por %p73, %p74
      %p76 = scmp.ne.s32.totalorder %s65, %s68
      %p77 = scmp.eq.s32.totalorder %s18, 1
      %p78 = por %p76, %p77
      %p79 = scmp.ne.s32.totalorder %s68, %s69
      %p80 = scmp.eq.s32.totalorder %s18, 0
      %p81 = por %p79, %p80
      %p82 = scmp.ne.s32.totalorder %s68, %s69
      %p83 = scmp.eq.s32.totalorder %s19, 1
      %p84 = por %p82, %p83
      %p86 = scmp.ne.s32.totalorder %s69, %s85
      %p87 = scmp.eq.s32.totalorder %s19, 0
      %p88 = por %p86, %p87
      %p89 = scmp.le.s32.totalorder 1, %s13
      %p90 = scmp.lt.s32.totalorder %s13, 3
      %p91 = pnand %p89, %p90
      %p92 = pneg %p91
      // Predicated region
      $region9: #{tpu_custom_call.1} parent=5 // pred_check
        _
      $region10: #{tpu_custom_call.1} parent=5 // pred_check_branch
        %94 = sbr.rel (%p91) target = $region12
      $region11: #{tpu_custom_call.1} parent=5 // pred_region
        %s95 = ssub.s32 %s13, 1
      $region12: #{tpu_custom_call.1} parent=5 // pred_fallthru
        _
      %p96 = scmp.lt.s32.totalorder %s13, 2
      // Predicated region
      $region13: #{tpu_custom_call.1} parent=5 // pred_check
        %p97 = pneg %p96
      $region14: #{tpu_custom_call.1} parent=5 // pred_check_branch
        %99 = sbr.rel (%p97) target = $region16
      $region15: #{tpu_custom_call.1} parent=5 // pred_region
        // Predicated region
        $region17: #{tpu_custom_call.1} parent=15 // pred_check
          %p100 = pneg %p47
        $region18: #{tpu_custom_call.1} parent=15 // pred_check_branch
          %102 = sbr.rel (%p100) target = $region20
        $region19: #{tpu_custom_call.1} parent=15 // pred_region
          %s103 = sand.u32 %s37, 1
          %s104 = scalar_lea.sflag [#allocation3], %s103
          %s105 = sand.u32 %s37, 1
          %s106 = smul.addr %s105, 128
          %s107 = scalar_lea.vmem [#allocation2], %s106
          %s108 = smul.u32 2, %s20
          %s109 = smul.u32 2, %s21
          %111 = vsyncadd %s104, 0
          %s112 = smul.addr %s108, 8
          %s113 = sadd.s32 %s109, %s112
          %s114 = smul.addr %s113, 8
          %s115 = scalar_lea.hbm %s0, %s114
          %s116 = sshll.u32 %s115, 4
          %s117 = int_to_ptr.hbm [resolvable:$true] %s116
          %s118 = sshll.u32 %s107, 4
          %s119 = int_to_ptr.vmem [resolvable:$true] %s118
          %124 = dma.hbm_to_vmem [thread:$0]  %s117, 2048, %s119, %s104, 128, 128, 8
        $region20: #{tpu_custom_call.1} parent=15 // pred_fallthru
          _
      $region16: #{tpu_custom_call.1} parent=5 // pred_fallthru
        _
      %p125 = scmp.le.s32.totalorder 1, %s13
      %p126 = scmp.lt.s32.totalorder %s13, 3
      %p127 = pnand %p125, %p126
      %p128 = pneg %p127
      // Predicated region
      $region21: #{tpu_custom_call.1} parent=5 // pred_check
        _
      $region22: #{tpu_custom_call.1} parent=5 // pred_check_branch
        %130 = sbr.rel (%p127) target = $region24
      $region23: #{tpu_custom_call.1} parent=5 // pred_region
        %s131 = ssub.s32 %s13, 1
        %s132 = sand.u32 %s40, 1
        %s133 = scalar_lea.sflag [#allocation3], %s132
        %s134 = sand.u32 %s40, 1
        %s135 = smul.addr %s134, 128
        %s136 = scalar_lea.vmem [#allocation2], %s135
        // Predicated region
        $region25: #{tpu_custom_call.1} parent=23 // pred_check
          %p137 = pneg %p53
        $region26: #{tpu_custom_call.1} parent=23 // pred_check_branch
          %139 = sbr.rel (%p137) target = $region28
        $region27: #{tpu_custom_call.1} parent=23 // pred_region
          %141 = dma.done %s133, 2048
        $region28: #{tpu_custom_call.1} parent=23 // pred_fallthru
          _
        %s142 = sand.u32 %s40, 1
        %s143 = scalar_lea.sflag [#allocation3], %s142
        %s144 = sand.u32 %s40, 1
        %s145 = smul.addr %s144, 128
        %s146 = scalar_lea.vmem [#allocation2], %s145
        %p147 = pneg %p53
        %p148 = pneg %p50
        %p149 = pneg %p81
        %p150 = pneg %p78
        %s151 = sand.u32 %s68, 1
        %s152 = scalar_lea.sflag [#allocation4], %s151
        %s153 = sand.u32 %s68, 1
        %s154 = smul.addr %s153, 32
        %s155 = scalar_lea.vmem [#allocation5], %s154
        %s156 = smul.u32 2, %s22
        %s157 = smul.u32 2, %s23
        %s158 = smul.u32 2, %s22
        %s159 = smul.u32 2, %s23
        %v160 = vlaneseq
        %v161 = vand.u32 %v160, 127
        %v162 = vand.u32 %v161, 31
        %vm163 = vcmp.ge.s32.totalorder %v162, 8
        %vm164 = vcmp.lt.s32.totalorder %v162, 16
        %vm165 = vmand %vm163, %vm164
        %vm166 = vcmp.ge.s32.totalorder %v162, 16
        %vm167 = vcmp.lt.s32.totalorder %v162, 24
        %vm168 = vmand %vm166, %vm167
        %v169 = vadd.s32 %v161, 8
        %v170 = vsub.s32 %v161, 8
        %v171 = vsel %vm168, %v170, %v161
        %v172 = vsel %vm165, %v169, %v171
        %vm173 = vcmask 1047808
        %174 = vrot.lane.b32.xlu0 %v161, 32
        %v175 = vpop.permute.xlu0 %174
        %v176 = vsel %vm173, %v175, %v161
        %177 = vrot.lane.b32.xlu0 %v176, 32
        %v178 = vpop.permute.xlu0 %177
        %v179 = vsel %vm173, %v178, %v161
        %180 = vrot.lane.b32.xlu0 %v172, 24
        %v181 = vpop.permute.xlu0 %180
        %vm182 = vcmp.eq.s32.totalorder %v179, %v181
        %183 = vrot.lane.b32.xlu0 %v172, 8
        %v184 = vpop.permute.xlu0 %183
        %vm185 = vcmp.eq.s32.totalorder %v179, %v184
        %v186 = vand.u32 %v161, 15
        %vm187 = vcmp.ge.s32.totalorder %v186, 4
        %vm188 = vcmp.lt.s32.totalorder %v186, 8
        %vm189 = vmand %vm187, %vm188
        %vm190 = vcmp.ge.s32.totalorder %v186, 8
        %vm191 = vcmp.lt.s32.totalorder %v186, 12
        %vm192 = vmand %vm190, %vm191
        %v193 = vadd.s32 %v161, 4
        %v194 = vsub.s32 %v161, 4
        %v195 = vsel %vm192, %v194, %v161
        %v196 = vsel %vm189, %v193, %v195
        %197 = vrot.lane.b32.xlu0 %v196, 28
        %v198 = vpop.permute.xlu0 %197
        %vm199 = vcmp.eq.s32.totalorder %v179, %v198
        %200 = vrot.lane.b32.xlu0 %v196, 4
        %v201 = vpop.permute.xlu0 %200
        %vm202 = vcmp.eq.s32.totalorder %v179, %v201
        %v203 = vand.u32 %v161, 7
        %vm204 = vcmp.ge.s32.totalorder %v203, 2
        %vm205 = vcmp.lt.s32.totalorder %v203, 4
        %vm206 = vmand %vm204, %vm205
        %vm207 = vcmp.ge.s32.totalorder %v203, 4
        %vm208 = vcmp.lt.s32.totalorder %v203, 6
        %vm209 = vmand %vm207, %vm208
        %v210 = vadd.s32 %v161, 2
        %v211 = vsub.s32 %v161, 2
        %v212 = vsel %vm209, %v211, %v161
        %v213 = vsel %vm206, %v210, %v212
        %214 = vrot.lane.b32.xlu0 %v213, 30
        %v215 = vpop.permute.xlu0 %214
        %vm216 = vcmp.eq.s32.totalorder %v179, %v215
        %217 = vrot.lane.b32.xlu0 %v213, 2
        %v218 = vpop.permute.xlu0 %217
        %vm219 = vcmp.eq.s32.totalorder %v179, %v218
        %v220 = vand.u32 %v161, 3
        %vm221 = vcmp.ge.s32.totalorder %v220, 1
        %vm222 = vcmp.lt.s32.totalorder %v220, 2
        %vm223 = vmand %vm221, %vm222
        %vm224 = vcmp.ge.s32.totalorder %v220, 2
        %vm225 = vcmp.lt.s32.totalorder %v220, 3
        %vm226 = vmand %vm224, %vm225
        %v227 = vadd.s32 %v161, 1
        %v228 = vsub.s32 %v161, 1
        %v229 = vsel %vm226, %v228, %v161
        %v230 = vsel %vm223, %v227, %v229
        %231 = vrot.lane.b32.xlu0 %v230, 31
        %v232 = vpop.permute.xlu0 %231
        %vm233 = vcmp.eq.s32.totalorder %v179, %v232
        %234 = vrot.lane.b32.xlu0 %v230, 1
        %v235 = vpop.permute.xlu0 %234
        %vm236 = vcmp.eq.s32.totalorder %v179, %v235
        loop: start=0, step=1, limit=2
        $region29: #{tpu_custom_call.1} parent=23 // loop_pre_header
          _
        $region30: #{tpu_custom_call.1} parent=23 // loop_header
          %s238 = sphi 0, %s242
          %p239 = scmp.ge.s32.totalorder %s238, 2
        $region31: #{tpu_custom_call.1} parent=23 // loop_header_branch
          %241 = sbr.rel (%p239) target = $region35
        $region32: #{tpu_custom_call.1} parent=23 // loop_body
          %s243 = smul.u32 %s238, 64
          %s244 = sadd.s32 0, %s243
          %s245 = scalar_lea.vmem %s136, %s244 [#allocation2]
          %v246 = vld [vmem:[%s245] sm:$0xff]
          %v247 = vld [vmem:[%s245 + $0x8] sm:$0xff]
          %s248 = sadd.s32 0, 16
          %s249 = sadd.s32 %s248, %s243
          %s250 = scalar_lea.vmem %s136, %s249 [#allocation2]
          %v251 = vld [vmem:[%s250] sm:$0xff]
          %v252 = vld [vmem:[%s250 + $0x8] sm:$0xff]
          %255 = vrot.lane.b32.xlu0 %v251, 16
          %v256 = vpop.permute.xlu0 %255
          %257 = vrot.lane.b32.xlu0 %v252, 16
          %v258 = vpop.permute.xlu0 %257
          %vm261 = vcmask 130048
          %v262 = vsel %vm261, %v246, %v256
          %v263 = vsel %vm261, %v247, %v258
          %264 = vrot.lane.b32.xlu0 %v262, 32
          %v265 = vpop.permute.xlu0 %264
          %v266 = vsel %vm173, %v265, %v262
          %267 = vrot.lane.b32.xlu0 %v263, 32
          %v268 = vpop.permute.xlu0 %267
          %v269 = vsel %vm173, %v268, %v263
          %270 = vrot.lane.b32.xlu0 %v266, 32
          %v271 = vpop.permute.xlu0 %270
          %272 = vrot.lane.b32.xlu0 %v269, 32
          %v273 = vpop.permute.xlu0 %272
          %v274 = vsel %vm173, %v271, %v262
          %v275 = vsel %vm173, %v273, %v263
          %v276 = vsel %vm185, 1, 0
          %v277 = vperm.slane %v276, 0
          %vm278 = vcmp.eq.s32.totalorder %v277, 1
          %281 = vrot.lane.b32.xlu0 %v262, 8
          %v282 = vpop.permute.xlu0 %281
          %283 = vrot.lane.b32.xlu0 %v263, 8
          %v284 = vpop.permute.xlu0 %283
          %v287 = vsel %vm278, %v274, %v282
          %v288 = vsel %vm278, %v275, %v284
          %v289 = vsel %vm182, 1, 0
          %v290 = vperm.slane %v289, 0
          %vm291 = vcmp.eq.s32.totalorder %v290, 1
          %294 = vrot.lane.b32.xlu0 %v287, 16
          %v295 = vpop.permute.xlu0 %294
          %296 = vrot.lane.b32.xlu0 %v288, 16
          %v297 = vpop.permute.xlu0 %296
          %v300 = vsel %vm291, %v274, %v295
          %v301 = vsel %vm291, %v275, %v297
          %304 = vrot.lane.b32.xlu0 %v300, 104
          %v305 = vpop.permute.xlu0 %304
          %306 = vrot.lane.b32.xlu0 %v301, 104
          %v307 = vpop.permute.xlu0 %306
          %310 = vrot.lane.b32.xlu0 %v305, 32
          %v311 = vpop.permute.xlu0 %310
          %v312 = vsel %vm173, %v311, %v305
          %313 = vrot.lane.b32.xlu0 %v307, 32
          %v314 = vpop.permute.xlu0 %313
          %v315 = vsel %vm173, %v314, %v307
          %316 = vrot.lane.b32.xlu0 %v312, 32
          %v317 = vpop.permute.xlu0 %316
          %318 = vrot.lane.b32.xlu0 %v315, 32
          %v319 = vpop.permute.xlu0 %318
          %v320 = vsel %vm173, %v317, %v305
          %v321 = vsel %vm173, %v319, %v307
          %v322 = vsel %vm202, 1, 0
          %v323 = vperm.slane %v322, 0
          %vm324 = vcmp.eq.s32.totalorder %v323, 1
          %325 = vrot.lane.b32.xlu0 %v300, 108
          %v326 = vpop.permute.xlu0 %325
          %327 = vrot.lane.b32.xlu0 %v301, 108
          %v328 = vpop.permute.xlu0 %327
          %v331 = vsel %vm324, %v320, %v326
          %v332 = vsel %vm324, %v321, %v328
          %v333 = vsel %vm199, 1, 0
          %v334 = vperm.slane %v333, 0
          %vm335 = vcmp.eq.s32.totalorder %v334, 1
          %338 = vrot.lane.b32.xlu0 %v331, 24
          %v339 = vpop.permute.xlu0 %338
          %340 = vrot.lane.b32.xlu0 %v332, 24
          %v341 = vpop.permute.xlu0 %340
          %v344 = vsel %vm335, %v320, %v339
          %v345 = vsel %vm335, %v321, %v341
          %348 = vrot.lane.b32.xlu0 %v344, 100
          %v349 = vpop.permute.xlu0 %348
          %350 = vrot.lane.b32.xlu0 %v345, 100
          %v351 = vpop.permute.xlu0 %350
          %354 = vrot.lane.b32.xlu0 %v349, 32
          %v355 = vpop.permute.xlu0 %354
          %v356 = vsel %vm173, %v355, %v349
          %357 = vrot.lane.b32.xlu0 %v351, 32
          %v358 = vpop.permute.xlu0 %357
          %v359 = vsel %vm173, %v358, %v351
          %360 = vrot.lane.b32.xlu0 %v356, 32
          %v361 = vpop.permute.xlu0 %360
          %362 = vrot.lane.b32.xlu0 %v359, 32
          %v363 = vpop.permute.xlu0 %362
          %v364 = vsel %vm173, %v361, %v349
          %v365 = vsel %vm173, %v363, %v351
          %v366 = vsel %vm219, 1, 0
          %v367 = vperm.slane %v366, 0
          %vm368 = vcmp.eq.s32.totalorder %v367, 1
          %369 = vrot.lane.b32.xlu0 %v344, 102
          %v370 = vpop.permute.xlu0 %369
          %371 = vrot.lane.b32.xlu0 %v345, 102
          %v372 = vpop.permute.xlu0 %371
          %v375 = vsel %vm368, %v364, %v370
          %v376 = vsel %vm368, %v365, %v372
          %v377 = vsel %vm216, 1, 0
          %v378 = vperm.slane %v377, 0
          %vm379 = vcmp.eq.s32.totalorder %v378, 1
          %382 = vrot.lane.b32.xlu0 %v375, 28
          %v383 = vpop.permute.xlu0 %382
          %384 = vrot.lane.b32.xlu0 %v376, 28
          %v385 = vpop.permute.xlu0 %384
          %v388 = vsel %vm379, %v364, %v383
          %v389 = vsel %vm379, %v365, %v385
          %392 = vrot.lane.b32.xlu0 %v388, 98
          %v393 = vpop.permute.xlu0 %392
          %394 = vrot.lane.b32.xlu0 %v389, 98
          %v395 = vpop.permute.xlu0 %394
          %398 = vrot.lane.b32.xlu0 %v393, 32
          %v399 = vpop.permute.xlu0 %398
          %v400 = vsel %vm173, %v399, %v393
          %401 = vrot.lane.b32.xlu0 %v395, 32
          %v402 = vpop.permute.xlu0 %401
          %v403 = vsel %vm173, %v402, %v395
          %404 = vrot.lane.b32.xlu0 %v400, 32
          %v405 = vpop.permute.xlu0 %404
          %406 = vrot.lane.b32.xlu0 %v403, 32
          %v407 = vpop.permute.xlu0 %406
          %v408 = vsel %vm173, %v405, %v393
          %v409 = vsel %vm173, %v407, %v395
          %v410 = vsel %vm236, 1, 0
          %v411 = vperm.slane %v410, 0
          %vm412 = vcmp.eq.s32.totalorder %v411, 1
          %413 = vrot.lane.b32.xlu0 %v388, 99
          %v414 = vpop.permute.xlu0 %413
          %415 = vrot.lane.b32.xlu0 %v389, 99
          %v416 = vpop.permute.xlu0 %415
          %v419 = vsel %vm412, %v408, %v414
          %v420 = vsel %vm412, %v409, %v416
          %v421 = vsel %vm233, 1, 0
          %v422 = vperm.slane %v421, 0
          %vm423 = vcmp.eq.s32.totalorder %v422, 1
          %426 = vrot.lane.b32.xlu0 %v419, 30
          %v427 = vpop.permute.xlu0 %426
          %428 = vrot.lane.b32.xlu0 %v420, 30
          %v429 = vpop.permute.xlu0 %428
          %v432 = vsel %vm423, %v408, %v427
          %v433 = vsel %vm423, %v409, %v429
          %436 = vrot.lane.b32.xlu0 %v432, 97
          %v437 = vpop.permute.xlu0 %436
          %438 = vrot.lane.b32.xlu0 %v433, 97
          %v439 = vpop.permute.xlu0 %438
          %s442 = smul.u32 %s238, 16
          %s443 = sadd.s32 0, %s442
          %s444 = scalar_lea.vmem %s155, %s443 [#allocation5]
          %vm445 = vcmask 261120
          %446 = vst.msk [vmem:[%s444] sm:$0xff] %vm445, %v437
          %447 = vst.msk [vmem:[%s444 + $0x8] sm:$0xff] %vm445, %v439
          %s448 = sadd.s32 0, 32
          %s449 = sadd.s32 %s448, %s243
          %s450 = scalar_lea.vmem %s136, %s449 [#allocation2]
          %v451 = vld [vmem:[%s450] sm:$0xff]
          %v452 = vld [vmem:[%s450 + $0x8] sm:$0xff]
          %s453 = sadd.s32 0, 48
          %s454 = sadd.s32 %s453, %s243
          %s455 = scalar_lea.vmem %s136, %s454 [#allocation2]
          %v456 = vld [vmem:[%s455] sm:$0xff]
          %v457 = vld [vmem:[%s455 + $0x8] sm:$0xff]
          %460 = vrot.lane.b32.xlu0 %v456, 16
          %v461 = vpop.permute.xlu0 %460
          %462 = vrot.lane.b32.xlu0 %v457, 16
          %v463 = vpop.permute.xlu0 %462
          %v466 = vsel %vm261, %v451, %v461
          %v467 = vsel %vm261, %v452, %v463
          %468 = vrot.lane.b32.xlu0 %v466, 32
          %v469 = vpop.permute.xlu0 %468
          %v470 = vsel %vm173, %v469, %v466
          %471 = vrot.lane.b32.xlu0 %v467, 32
          %v472 = vpop.permute.xlu0 %471
          %v473 = vsel %vm173, %v472, %v467
          %474 = vrot.lane.b32.xlu0 %v470, 32
          %v475 = vpop.permute.xlu0 %474
          %476 = vrot.lane.b32.xlu0 %v473, 32
          %v477 = vpop.permute.xlu0 %476
          %v478 = vsel %vm173, %v475, %v466
          %v479 = vsel %vm173, %v477, %v467
          %482 = vrot.lane.b32.xlu0 %v466, 8
          %v483 = vpop.permute.xlu0 %482
          %484 = vrot.lane.b32.xlu0 %v467, 8
          %v485 = vpop.permute.xlu0 %484
          %v488 = vsel %vm278, %v478, %v483
          %v489 = vsel %vm278, %v479, %v485
          %492 = vrot.lane.b32.xlu0 %v488, 16
          %v493 = vpop.permute.xlu0 %492
          %494 = vrot.lane.b32.xlu0 %v489, 16
          %v495 = vpop.permute.xlu0 %494
          %v498 = vsel %vm291, %v478, %v493
          %v499 = vsel %vm291, %v479, %v495
          %502 = vrot.lane.b32.xlu0 %v498, 104
          %v503 = vpop.permute.xlu0 %502
          %504 = vrot.lane.b32.xlu0 %v499, 104
          %v505 = vpop.permute.xlu0 %504
          %508 = vrot.lane.b32.xlu0 %v503, 32
          %v509 = vpop.permute.xlu0 %508
          %v510 = vsel %vm173, %v509, %v503
          %511 = vrot.lane.b32.xlu0 %v505, 32
          %v512 = vpop.permute.xlu0 %511
          %v513 = vsel %vm173, %v512, %v505
          %514 = vrot.lane.b32.xlu0 %v510, 32
          %v515 = vpop.permute.xlu0 %514
          %516 = vrot.lane.b32.xlu0 %v513, 32
          %v517 = vpop.permute.xlu0 %516
          %v518 = vsel %vm173, %v515, %v503
          %v519 = vsel %vm173, %v517, %v505
          %520 = vrot.lane.b32.xlu0 %v498, 108
          %v521 = vpop.permute.xlu0 %520
          %522 = vrot.lane.b32.xlu0 %v499, 108
          %v523 = vpop.permute.xlu0 %522
          %v526 = vsel %vm324, %v518, %v521
          %v527 = vsel %vm324, %v519, %v523
          %530 = vrot.lane.b32.xlu0 %v526, 24
          %v531 = vpop.permute.xlu0 %530
          %532 = vrot.lane.b32.xlu0 %v527, 24
          %v533 = vpop.permute.xlu0 %532
          %v536 = vsel %vm335, %v518, %v531
          %v537 = vsel %vm335, %v519, %v533
          %540 = vrot.lane.b32.xlu0 %v536, 100
          %v541 = vpop.permute.xlu0 %540
          %542 = vrot.lane.b32.xlu0 %v537, 100
          %v543 = vpop.permute.xlu0 %542
          %546 = vrot.lane.b32.xlu0 %v541, 32
          %v547 = vpop.permute.xlu0 %546
          %v548 = vsel %vm173, %v547, %v541
          %549 = vrot.lane.b32.xlu0 %v543, 32
          %v550 = vpop.permute.xlu0 %549
          %v551 = vsel %vm173, %v550, %v543
          %552 = vrot.lane.b32.xlu0 %v548, 32
          %v553 = vpop.permute.xlu0 %552
          %554 = vrot.lane.b32.xlu0 %v551, 32
          %v555 = vpop.permute.xlu0 %554
          %v556 = vsel %vm173, %v553, %v541
          %v557 = vsel %vm173, %v555, %v543
          %558 = vrot.lane.b32.xlu0 %v536, 102
          %v559 = vpop.permute.xlu0 %558
          %560 = vrot.lane.b32.xlu0 %v537, 102
          %v561 = vpop.permute.xlu0 %560
          %v564 = vsel %vm368, %v556, %v559
          %v565 = vsel %vm368, %v557, %v561
          %568 = vrot.lane.b32.xlu0 %v564, 28
          %v569 = vpop.permute.xlu0 %568
          %570 = vrot.lane.b32.xlu0 %v565, 28
          %v571 = vpop.permute.xlu0 %570
          %v574 = vsel %vm379, %v556, %v569
          %v575 = vsel %vm379, %v557, %v571
          %578 = vrot.lane.b32.xlu0 %v574, 98
          %v579 = vpop.permute.xlu0 %578
          %580 = vrot.lane.b32.xlu0 %v575, 98
          %v581 = vpop.permute.xlu0 %580
          %584 = vrot.lane.b32.xlu0 %v579, 32
          %v585 = vpop.permute.xlu0 %584
          %v586 = vsel %vm173, %v585, %v579
          %587 = vrot.lane.b32.xlu0 %v581, 32
          %v588 = vpop.permute.xlu0 %587
          %v589 = vsel %vm173, %v588, %v581
          %590 = vrot.lane.b32.xlu0 %v586, 32
          %v591 = vpop.permute.xlu0 %590
          %592 = vrot.lane.b32.xlu0 %v589, 32
          %v593 = vpop.permute.xlu0 %592
          %v594 = vsel %vm173, %v591, %v579
          %v595 = vsel %vm173, %v593, %v581
          %596 = vrot.lane.b32.xlu0 %v574, 99
          %v597 = vpop.permute.xlu0 %596
          %598 = vrot.lane.b32.xlu0 %v575, 99
          %v599 = vpop.permute.xlu0 %598
          %v602 = vsel %vm412, %v594, %v597
          %v603 = vsel %vm412, %v595, %v599
          %606 = vrot.lane.b32.xlu0 %v602, 30
          %v607 = vpop.permute.xlu0 %606
          %608 = vrot.lane.b32.xlu0 %v603, 30
          %v609 = vpop.permute.xlu0 %608
          %v612 = vsel %vm423, %v594, %v607
          %v613 = vsel %vm423, %v595, %v609
          %616 = vrot.lane.b32.xlu0 %v612, 1
          %v617 = vpop.permute.xlu0 %616
          %618 = vrot.lane.b32.xlu0 %v613, 1
          %v619 = vpop.permute.xlu0 %618
          %vm622 = vcmask 523520
          %623 = vst.msk [vmem:[%s444] sm:$0xff] %vm622, %v617
          %624 = vst.msk [vmem:[%s444 + $0x8] sm:$0xff] %vm622, %v619
        $region33: #{tpu_custom_call.1} parent=23 // loop_footer
          %s242 = sadd.s32 1, %s238
        $region34: #{tpu_custom_call.1} parent=23 // loop_footer_branch
          %237 = sbr.rel target = $region30
        $region35: #{tpu_custom_call.1} parent=23 // loop_exit
          _
        %s625 = sand.u32 %s68, 1
        %s626 = scalar_lea.sflag [#allocation4], %s625
        %s627 = sand.u32 %s68, 1
        %s628 = smul.addr %s627, 32
        %s629 = scalar_lea.vmem [#allocation5], %s628
        // Predicated region
        $region36: #{tpu_custom_call.1} parent=23 // pred_check
          %p630 = pneg %p78
        $region37: #{tpu_custom_call.1} parent=23 // pred_check_branch
          %632 = sbr.rel (%p630) target = $region39
        $region38: #{tpu_custom_call.1} parent=23 // pred_region
          %s633 = smul.u32 2, %s22
          %s634 = smul.u32 2, %s23
          %636 = vsyncadd %s626, 0
          %s637 = smul.addr %s633, 2
          %s638 = sadd.s32 %s634, %s637
          %s639 = smul.addr %s638, 8
          %s640 = scalar_lea.hbm %s1, %s639
          %s641 = sshll.u32 %s629, 4
          %s642 = int_to_ptr.vmem [resolvable:$true] %s641
          %s643 = sshll.u32 %s640, 4
          %s644 = int_to_ptr.hbm [resolvable:$true] %s643
          %649 = dma.vmem_to_hbm [thread:$0]  %s642, 512, %s644, %s626, 128, 128, 8
        $region39: #{tpu_custom_call.1} parent=23 // pred_fallthru
          _
      $region24: #{tpu_custom_call.1} parent=5 // pred_fallthru
        _
      %p650 = scmp.le.s32.totalorder 2, %s13
      // Predicated region
      $region40: #{tpu_custom_call.1} parent=5 // pred_check
        %p651 = pneg %p650
      $region41: #{tpu_custom_call.1} parent=5 // pred_check_branch
        %653 = sbr.rel (%p651) target = $region43
      $region42: #{tpu_custom_call.1} parent=5 // pred_region
        %s654 = ssub.s32 %s13, 2
        // Predicated region
        $region44: #{tpu_custom_call.1} parent=42 // pred_check
          %p655 = pneg %p84
        $region45: #{tpu_custom_call.1} parent=42 // pred_check_branch
          %657 = sbr.rel (%p655) target = $region47
        $region46: #{tpu_custom_call.1} parent=42 // pred_region
          %s658 = sand.u32 %s69, 1
          %s659 = scalar_lea.sflag [#allocation4], %s658
          %s660 = sand.u32 %s69, 1
          %s661 = smul.addr %s660, 32
          %s662 = scalar_lea.vmem [#allocation5], %s661
          %664 = dma.done %s659, 512
        $region47: #{tpu_custom_call.1} parent=42 // pred_fallthru
          _
      $region43: #{tpu_custom_call.1} parent=5 // pred_fallthru
        _
    $region6: #{tpu_custom_call.1} parent=1 // loop_footer
      %s17 = sadd.s32 1, %s13
    $region7: #{tpu_custom_call.1} parent=1 // loop_footer_branch
      %12 = sbr.rel target = $region3
    $region8: #{tpu_custom_call.1} parent=1 // loop_exit
      _
    %665 = vsyncpa [#allocation3], 1
    %s666 = scalar_lea.sflag [#allocation3], 1
    %667 = vsyncpa %s666, 1
    %668 = vsyncpa [#allocation4], 1
    %s669 = scalar_lea.sflag [#allocation4], 1
    %670 = vsyncpa %s669, 1

</llo_original>
